<compile_context>
chip_gen: v7x
topology: tpu7x:2x2x1
jax: 0.10.0
libtpu: 0.0.40
codegen_flags: <defaults>
</compile_context>

<pallas_src>
import functools

import jax
import jax.numpy as jnp
import numpy as np
from jax import lax
from jax.experimental import pallas as pl
from jax.experimental.pallas import tpu as pltpu

PIANO_RANGE = (21, 109)                       # 88 piano keys
N_PITCHES = PIANO_RANGE[1] - PIANO_RANGE[0]   # 88
N_FRAMES_PER_DATAPOINT = 64                   # small synthetic value

# PerformanceNetHParam (synthetic, small)
DEPTH = 3
START_CHANNELS = 32
END_CHANNELS = 16


def performance_net_kernel(x_ref, w_in_ref, b_in_ref,
                           w1_ref, b1_ref, w2_ref, b2_ref, w3_ref, b3_ref,
                           o_ref, *, t_len):
    BT = x_ref.shape[1]

    # Boundary masks, hoisted: ONE iota/mod/compare reused by all three convs.
    col = lax.broadcasted_iota(jnp.int32, (1, BT), 1)
    tpos = col % t_len
    is_first = tpos == 0            # first frame of each datapoint
    is_last = tpos == t_len - 1     # last frame of each datapoint

    def conv3(h, w_ref, b_ref):
        """1-D conv (kernel=3, 'same') on a channels-first (cin, B*T) slab.

        Dual formulation: w_ref holds [W0^T; W1^T; W2^T] stacked along rows,
        shape (3*cout, cin). One MXU matmul produces the three tap outputs;
        the left/right taps are then rolled along lanes, zero-masked at each
        per-datapoint time boundary, and summed.
        """
        cout = w_ref.shape[0] // 3
        z = jnp.dot(w_ref[...], h.astype(jnp.bfloat16),
                    preferred_element_type=jnp.float32)        # (3*cout, BT)
        z_l = z[:cout]
        z_c = z[cout:2 * cout]
        z_r = z[2 * cout:]
        left = jnp.where(is_first, 0.0, jnp.roll(z_l, 1, axis=1))
        right = jnp.where(is_last, 0.0, jnp.roll(z_r, -1, axis=1))
        return z_c + left + right + b_ref[...]

    # inProjector (Linear F -> start_channels), channels-first: W_in^T x + b.
    h = jnp.dot(w_in_ref[...], x_ref[...],
                preferred_element_type=jnp.float32) + b_in_ref[...]
    # TODO(synk): exact PerformanceNet internals unavailable; the
    # zeros_like(x) condition argument contributes nothing and is omitted.
    h = jax.nn.relu(conv3(h, w1_ref, b1_ref))
    h = jax.nn.relu(conv3(h, w2_ref, b2_ref))
    z = conv3(h, w3_ref, b3_ref)
    # log(sigmoid(z)) head, numerically stable; output is lane-dense (16,128).
    o_ref[...] = jnp.minimum(z, 0.0) - jnp.log1p(jnp.exp(-jnp.abs(z)))


def pack_params(params):
    """One-time weight repack (call OUTSIDE the per-inference path)."""
    w_in, b_in, w1, b1, w2, b2, w3, b3 = params

    def stack(w):       # (3, cin, cout) -> (3*cout, cin), taps along rows
        return jnp.concatenate([w[0].T, w[1].T, w[2].T],
                               axis=0).astype(jnp.bfloat16)

    def col(b):         # (c,) -> (c, 1) f32 column for lane broadcast
        return b.reshape(-1, 1).astype(jnp.float32)

    return (w_in.T.astype(jnp.bfloat16), col(b_in),
            stack(w1), col(b1), stack(w2), col(b2), stack(w3), col(b3))


def performance_net_model(x, packed_params):
    B, n_ch, n_pitch, T = x.shape
    assert n_ch == 2
    assert n_pitch == N_PITCHES
    assert T == N_FRAMES_PER_DATAPOINT
    F = n_ch * n_pitch

    # Lane-pack the batch in the wrapper: (F, B*T), time fastest per batch
    # element (column index = b*T + t, whole datapoints contiguous).
    x_r = (x.reshape(B, F, T).transpose(1, 0, 2).reshape(F, B * T)
           .astype(jnp.bfloat16))

    c_end = packed_params[-2].shape[0] // 3

    vmem = pl.BlockSpec(memory_space=pltpu.MemorySpace.VMEM)
    kernel = functools.partial(performance_net_kernel, t_len=T)
    y = pl.pallas_call(
        kernel,
        out_shape=jax.ShapeDtypeStruct((c_end, B * T), jnp.float32),
        in_specs=[vmem] * (1 + len(packed_params)),
        out_specs=vmem,
    )(x_r, *packed_params)

    # Un-stack the lane-dense output to the PyTorch (B, c_end, T) layout.
    return y.reshape(c_end, B, T).transpose(1, 0, 2)


def init_params(key):
    ks = jax.random.split(key, 2 * (1 + DEPTH))

    def lin_init(k, fan_in, shape):
        return (jax.random.normal(k, shape, jnp.float32)
                / np.sqrt(fan_in)).astype(jnp.float32)

    F = 2 * N_PITCHES
    w_in = lin_init(ks[0], F, (F, START_CHANNELS))
    b_in = 0.1 * jax.random.normal(ks[1], (START_CHANNELS,), jnp.float32)

    chans = [START_CHANNELS] * DEPTH + [END_CHANNELS]
    convs = []
    for i in range(DEPTH):
        cin, cout = chans[i], chans[i + 1]
        w = lin_init(ks[2 + 2 * i], 3 * cin, (3, cin, cout))
        b = 0.1 * jax.random.normal(ks[3 + 2 * i], (cout,), jnp.float32)
        convs.append((w, b))
    (w1, b1), (w2, b2), (w3, b3) = convs
    return (w_in, b_in, w1, b1, w2, b2, w3, b3)


def reference(x, params):
    """Pure-JAX (features-last, f32, HIGHEST precision) reference."""
    HP = jax.lax.Precision.HIGHEST
    B, _, P, T = x.shape
    F = 2 * P
    xf = jnp.transpose(x.reshape(B, F, T), (0, 2, 1)).astype(jnp.float32)
    w_in, b_in, w1, b1, w2, b2, w3, b3 = params
    h = jnp.einsum('btf,fc->btc', xf, w_in, precision=HP) + b_in

    def conv3(h, w, b):
        center = jnp.einsum('btc,cd->btd', h, w[1], precision=HP)
        left = jnp.einsum('btc,cd->btd', h, w[0], precision=HP)
        right = jnp.einsum('btc,cd->btd', h, w[2], precision=HP)
        down = jnp.concatenate([jnp.zeros_like(left[:, :1]), left[:, :-1]],
                               axis=1)
        up = jnp.concatenate([right[:, 1:], jnp.zeros_like(right[:, :1])],
                             axis=1)
        return center + down + up + b

    h = jax.nn.relu(conv3(h, w1, b1))
    h = jax.nn.relu(conv3(h, w2, b2))
    h = jax.nn.sigmoid(conv3(h, w3, b3))
    return jnp.transpose(jnp.log(h), (0, 2, 1))


if __name__ == "__main__":
    key = jax.random.PRNGKey(0)
    pkey, xkey = jax.random.split(key)
    params = init_params(pkey)
    packed = pack_params(params)          # one-time repack, outside call path

    # (batch, pianoroll_channels=2, n_pitches=88, n_frames)
    x = jax.random.uniform(
        xkey, (2, 2, N_PITCHES, N_FRAMES_PER_DATAPOINT), dtype=jnp.float32)

    out = jax.jit(performance_net_model)(x, packed)
    out = jax.block_until_ready(out)

    assert out.shape == (2, END_CHANNELS, N_FRAMES_PER_DATAPOINT), out.shape
    ref = reference(x, params)
    # Tolerance covers bf16 MXU inputs (f32 accumulation) vs. the
    # HIGHEST-precision f32 XLA reference; functional errors (wrong taps,
    # wrong boundary masks, wrong packing) would be orders of magnitude larger.
    np.testing.assert_allclose(np.asarray(out), np.asarray(ref),
                               rtol=2e-2, atol=2e-2)
    assert np.all(np.isfinite(np.asarray(out)))
    print("KERNEL_OK")
</pallas_src>

<mosaic_0001>
module attributes {stable_mosaic.version = 11 : i64} {
  func.func @performance_net_kernel(%arg0: memref<176x128xbf16, #tpu.memory_space<vmem>>, %arg1: memref<32x176xbf16, #tpu.memory_space<vmem>>, %arg2: memref<32x1xf32, #tpu.memory_space<vmem>>, %arg3: memref<96x32xbf16, #tpu.memory_space<vmem>>, %arg4: memref<32x1xf32, #tpu.memory_space<vmem>>, %arg5: memref<96x32xbf16, #tpu.memory_space<vmem>>, %arg6: memref<32x1xf32, #tpu.memory_space<vmem>>, %arg7: memref<48x32xbf16, #tpu.memory_space<vmem>>, %arg8: memref<16x1xf32, #tpu.memory_space<vmem>>, %arg9: memref<16x128xf32, #tpu.memory_space<vmem>>) attributes {dimension_semantics = [], scalar_prefetch = 0 : i64, scratch_operands = 0 : i64, tpu.core_type = #tpu.core_type<tc>} {
    %0 = tpu.iota {dimensions = array<i32: 1>} : vector<1x128xi32>
    %c64_i32 = arith.constant 64 : i32
    %c0_i32 = arith.constant 0 : i32
    %1 = arith.cmpi eq, %c64_i32, %c0_i32 : i32
    %c1_i32 = arith.constant 1 : i32
    %2 = arith.select %1, %c1_i32, %c64_i32 : i32
    %3 = vector.broadcast %2 : i32 to vector<1x128xi32>
    %4 = arith.remsi %0, %3 : vector<1x128xi32>
    %c0_i32_0 = arith.constant 0 : i32
    %5 = vector.broadcast %c0_i32_0 : i32 to vector<1x128xi32>
    %6 = arith.cmpi ne, %4, %5 : vector<1x128xi32>
    %c0_i32_1 = arith.constant 0 : i32
    %7 = vector.broadcast %c0_i32_1 : i32 to vector<1x128xi32>
    %8 = arith.cmpi slt, %4, %7 : vector<1x128xi32>
    %c0_i32_2 = arith.constant 0 : i32
    %9 = arith.cmpi slt, %2, %c0_i32_2 : i32
    %10 = vector.broadcast %9 : i1 to vector<1x128xi1>
    %11 = vector.broadcast %10 : vector<1x128xi1> to vector<1x128xi1>
    %12 = arith.xori %8, %11 : vector<1x128xi1>
    %13 = arith.andi %12, %6 : vector<1x128xi1>
    %14 = vector.broadcast %2 : i32 to vector<1x128xi32>
    %15 = arith.addi %4, %14 : vector<1x128xi32>
    %16 = arith.select %13, %15, %4 : vector<1x128xi1>, vector<1x128xi32>
    %c0_i32_3 = arith.constant 0 : i32
    %17 = vector.broadcast %c0_i32_3 : i32 to vector<1x128xi32>
    %18 = arith.cmpi eq, %16, %17 : vector<1x128xi32>
    %c63_i32 = arith.constant 63 : i32
    %19 = vector.broadcast %c63_i32 : i32 to vector<1x128xi32>
    %20 = arith.cmpi eq, %16, %19 : vector<1x128xi32>
    %c0 = arith.constant 0 : index
    %c0_4 = arith.constant 0 : index
    %21 = vector.load %arg1[%c0, %c0_4] : memref<32x176xbf16, #tpu.memory_space<vmem>>, vector<32x176xbf16>
    %c0_5 = arith.constant 0 : index
    %c0_6 = arith.constant 0 : index
    %22 = vector.load %arg0[%c0_5, %c0_6] : memref<176x128xbf16, #tpu.memory_space<vmem>>, vector<176x128xbf16>
    %cst = arith.constant dense<0.000000e+00> : vector<32x128xf32>
    %23 = tpu.matmul %21, %22, %cst {dimension_numbers = #tpu.dot_dimension_numbers<[1], [0], [0], [1], [0, 0, 1, 1], [], []>} : vector<32x176xbf16>, vector<176x128xbf16>, vector<32x128xf32> -> vector<32x128xf32>
    %c0_7 = arith.constant 0 : index
    %c0_8 = arith.constant 0 : index
    %24 = vector.load %arg2[%c0_7, %c0_8] : memref<32x1xf32, #tpu.memory_space<vmem>>, vector<32x1xf32>
    %25 = vector.broadcast %24 : vector<32x1xf32> to vector<32x128xf32>
    %26 = arith.addf %23, %25 : vector<32x128xf32>
    %c0_9 = arith.constant 0 : index
    %c0_10 = arith.constant 0 : index
    %27 = vector.load %arg3[%c0_9, %c0_10] : memref<96x32xbf16, #tpu.memory_space<vmem>>, vector<96x32xbf16>
    %28 = arith.truncf %26 : vector<32x128xf32> to vector<32x128xbf16>
    %cst_11 = arith.constant dense<0.000000e+00> : vector<96x128xf32>
    %29 = tpu.matmul %27, %28, %cst_11 {dimension_numbers = #tpu.dot_dimension_numbers<[1], [0], [0], [1], [0, 0, 1, 1], [], []>} : vector<96x32xbf16>, vector<32x128xbf16>, vector<96x128xf32> -> vector<96x128xf32>
    %30 = vector.extract_strided_slice %29 {offsets = [0, 0], sizes = [32, 128], strides = [1, 1]} : vector<96x128xf32> to vector<32x128xf32>
    %31 = vector.extract_strided_slice %29 {offsets = [32, 0], sizes = [32, 128], strides = [1, 1]} : vector<96x128xf32> to vector<32x128xf32>
    %32 = vector.extract_strided_slice %29 {offsets = [64, 0], sizes = [32, 128], strides = [1, 1]} : vector<96x128xf32> to vector<32x128xf32>
    %33 = vector.extract_strided_slice %30 {offsets = [0, 127], sizes = [32, 1], strides = [1, 1]} : vector<32x128xf32> to vector<32x1xf32>
    %34 = vector.extract_strided_slice %30 {offsets = [0, 0], sizes = [32, 127], strides = [1, 1]} : vector<32x128xf32> to vector<32x127xf32>
    %35 = tpu.concatenate %33, %34 in 1 : vector<32x1xf32>, vector<32x127xf32> -> vector<32x128xf32>
    %cst_12 = arith.constant 0.000000e+00 : f32
    %36 = vector.shape_cast %18 : vector<1x128xi1> to vector<1x128xi1>
    %37 = vector.broadcast %36 : vector<1x128xi1> to vector<32x128xi1>
    %38 = vector.broadcast %cst_12 : f32 to vector<32x128xf32>
    %39 = arith.select %37, %38, %35 : vector<32x128xi1>, vector<32x128xf32>
    %40 = vector.extract_strided_slice %32 {offsets = [0, 1], sizes = [32, 127], strides = [1, 1]} : vector<32x128xf32> to vector<32x127xf32>
    %41 = vector.extract_strided_slice %32 {offsets = [0, 0], sizes = [32, 1], strides = [1, 1]} : vector<32x128xf32> to vector<32x1xf32>
    %42 = tpu.concatenate %40, %41 in 1 : vector<32x127xf32>, vector<32x1xf32> -> vector<32x128xf32>
    %cst_13 = arith.constant 0.000000e+00 : f32
    %43 = vector.shape_cast %20 : vector<1x128xi1> to vector<1x128xi1>
    %44 = vector.broadcast %43 : vector<1x128xi1> to vector<32x128xi1>
    %45 = vector.broadcast %cst_13 : f32 to vector<32x128xf32>
    %46 = arith.select %44, %45, %42 : vector<32x128xi1>, vector<32x128xf32>
    %47 = arith.addf %31, %39 : vector<32x128xf32>
    %48 = arith.addf %47, %46 : vector<32x128xf32>
    %c0_14 = arith.constant 0 : index
    %c0_15 = arith.constant 0 : index
    %49 = vector.load %arg4[%c0_14, %c0_15] : memref<32x1xf32, #tpu.memory_space<vmem>>, vector<32x1xf32>
    %50 = vector.broadcast %49 : vector<32x1xf32> to vector<32x128xf32>
    %51 = arith.addf %48, %50 : vector<32x128xf32>
    %cst_16 = arith.constant 0.000000e+00 : f32
    %52 = vector.broadcast %cst_16 : f32 to vector<32x128xf32>
    %53 = arith.maximumf %51, %52 : vector<32x128xf32>
    %c0_17 = arith.constant 0 : index
    %c0_18 = arith.constant 0 : index
    %54 = vector.load %arg5[%c0_17, %c0_18] : memref<96x32xbf16, #tpu.memory_space<vmem>>, vector<96x32xbf16>
    %55 = arith.truncf %53 : vector<32x128xf32> to vector<32x128xbf16>
    %cst_19 = arith.constant dense<0.000000e+00> : vector<96x128xf32>
    %56 = tpu.matmul %54, %55, %cst_19 {dimension_numbers = #tpu.dot_dimension_numbers<[1], [0], [0], [1], [0, 0, 1, 1], [], []>} : vector<96x32xbf16>, vector<32x128xbf16>, vector<96x128xf32> -> vector<96x128xf32>
    %57 = vector.extract_strided_slice %56 {offsets = [0, 0], sizes = [32, 128], strides = [1, 1]} : vector<96x128xf32> to vector<32x128xf32>
    %58 = vector.extract_strided_slice %56 {offsets = [32, 0], sizes = [32, 128], strides = [1, 1]} : vector<96x128xf32> to vector<32x128xf32>
    %59 = vector.extract_strided_slice %56 {offsets = [64, 0], sizes = [32, 128], strides = [1, 1]} : vector<96x128xf32> to vector<32x128xf32>
    %60 = vector.extract_strided_slice %57 {offsets = [0, 127], sizes = [32, 1], strides = [1, 1]} : vector<32x128xf32> to vector<32x1xf32>
    %61 = vector.extract_strided_slice %57 {offsets = [0, 0], sizes = [32, 127], strides = [1, 1]} : vector<32x128xf32> to vector<32x127xf32>
    %62 = tpu.concatenate %60, %61 in 1 : vector<32x1xf32>, vector<32x127xf32> -> vector<32x128xf32>
    %cst_20 = arith.constant 0.000000e+00 : f32
    %63 = vector.shape_cast %18 : vector<1x128xi1> to vector<1x128xi1>
    %64 = vector.broadcast %63 : vector<1x128xi1> to vector<32x128xi1>
    %65 = vector.broadcast %cst_20 : f32 to vector<32x128xf32>
    %66 = arith.select %64, %65, %62 : vector<32x128xi1>, vector<32x128xf32>
    %67 = vector.extract_strided_slice %59 {offsets = [0, 1], sizes = [32, 127], strides = [1, 1]} : vector<32x128xf32> to vector<32x127xf32>
    %68 = vector.extract_strided_slice %59 {offsets = [0, 0], sizes = [32, 1], strides = [1, 1]} : vector<32x128xf32> to vector<32x1xf32>
    %69 = tpu.concatenate %67, %68 in 1 : vector<32x127xf32>, vector<32x1xf32> -> vector<32x128xf32>
    %cst_21 = arith.constant 0.000000e+00 : f32
    %70 = vector.shape_cast %20 : vector<1x128xi1> to vector<1x128xi1>
    %71 = vector.broadcast %70 : vector<1x128xi1> to vector<32x128xi1>
    %72 = vector.broadcast %cst_21 : f32 to vector<32x128xf32>
    %73 = arith.select %71, %72, %69 : vector<32x128xi1>, vector<32x128xf32>
    %74 = arith.addf %58, %66 : vector<32x128xf32>
    %75 = arith.addf %74, %73 : vector<32x128xf32>
    %c0_22 = arith.constant 0 : index
    %c0_23 = arith.constant 0 : index
    %76 = vector.load %arg6[%c0_22, %c0_23] : memref<32x1xf32, #tpu.memory_space<vmem>>, vector<32x1xf32>
    %77 = vector.broadcast %76 : vector<32x1xf32> to vector<32x128xf32>
    %78 = arith.addf %75, %77 : vector<32x128xf32>
    %cst_24 = arith.constant 0.000000e+00 : f32
    %79 = vector.broadcast %cst_24 : f32 to vector<32x128xf32>
    %80 = arith.maximumf %78, %79 : vector<32x128xf32>
    %c0_25 = arith.constant 0 : index
    %c0_26 = arith.constant 0 : index
    %81 = vector.load %arg7[%c0_25, %c0_26] : memref<48x32xbf16, #tpu.memory_space<vmem>>, vector<48x32xbf16>
    %82 = arith.truncf %80 : vector<32x128xf32> to vector<32x128xbf16>
    %cst_27 = arith.constant dense<0.000000e+00> : vector<48x128xf32>
    %83 = tpu.matmul %81, %82, %cst_27 {dimension_numbers = #tpu.dot_dimension_numbers<[1], [0], [0], [1], [0, 0, 1, 1], [], []>} : vector<48x32xbf16>, vector<32x128xbf16>, vector<48x128xf32> -> vector<48x128xf32>
    %84 = vector.extract_strided_slice %83 {offsets = [0, 0], sizes = [16, 128], strides = [1, 1]} : vector<48x128xf32> to vector<16x128xf32>
    %85 = vector.extract_strided_slice %83 {offsets = [16, 0], sizes = [16, 128], strides = [1, 1]} : vector<48x128xf32> to vector<16x128xf32>
    %86 = vector.extract_strided_slice %83 {offsets = [32, 0], sizes = [16, 128], strides = [1, 1]} : vector<48x128xf32> to vector<16x128xf32>
    %87 = vector.extract_strided_slice %84 {offsets = [0, 127], sizes = [16, 1], strides = [1, 1]} : vector<16x128xf32> to vector<16x1xf32>
    %88 = vector.extract_strided_slice %84 {offsets = [0, 0], sizes = [16, 127], strides = [1, 1]} : vector<16x128xf32> to vector<16x127xf32>
    %89 = tpu.concatenate %87, %88 in 1 : vector<16x1xf32>, vector<16x127xf32> -> vector<16x128xf32>
    %cst_28 = arith.constant 0.000000e+00 : f32
    %90 = vector.shape_cast %18 : vector<1x128xi1> to vector<1x128xi1>
    %91 = vector.broadcast %90 : vector<1x128xi1> to vector<16x128xi1>
    %92 = vector.broadcast %cst_28 : f32 to vector<16x128xf32>
    %93 = arith.select %91, %92, %89 : vector<16x128xi1>, vector<16x128xf32>
    %94 = vector.extract_strided_slice %86 {offsets = [0, 1], sizes = [16, 127], strides = [1, 1]} : vector<16x128xf32> to vector<16x127xf32>
    %95 = vector.extract_strided_slice %86 {offsets = [0, 0], sizes = [16, 1], strides = [1, 1]} : vector<16x128xf32> to vector<16x1xf32>
    %96 = tpu.concatenate %94, %95 in 1 : vector<16x127xf32>, vector<16x1xf32> -> vector<16x128xf32>
    %cst_29 = arith.constant 0.000000e+00 : f32
    %97 = vector.shape_cast %20 : vector<1x128xi1> to vector<1x128xi1>
    %98 = vector.broadcast %97 : vector<1x128xi1> to vector<16x128xi1>
    %99 = vector.broadcast %cst_29 : f32 to vector<16x128xf32>
    %100 = arith.select %98, %99, %96 : vector<16x128xi1>, vector<16x128xf32>
    %101 = arith.addf %85, %93 : vector<16x128xf32>
    %102 = arith.addf %101, %100 : vector<16x128xf32>
    %c0_30 = arith.constant 0 : index
    %c0_31 = arith.constant 0 : index
    %103 = vector.load %arg8[%c0_30, %c0_31] : memref<16x1xf32, #tpu.memory_space<vmem>>, vector<16x1xf32>
    %104 = vector.broadcast %103 : vector<16x1xf32> to vector<16x128xf32>
    %105 = arith.addf %102, %104 : vector<16x128xf32>
    %cst_32 = arith.constant 0.000000e+00 : f32
    %106 = vector.broadcast %cst_32 : f32 to vector<16x128xf32>
    %107 = arith.minimumf %105, %106 : vector<16x128xf32>
    %108 = math.absf %105 : vector<16x128xf32>
    %cst_33 = arith.constant 0.000000e+00 : f32
    %109 = vector.broadcast %cst_33 : f32 to vector<16x128xf32>
    %110 = arith.subf %109, %108 : vector<16x128xf32>
    %111 = math.exp %110 : vector<16x128xf32>
    %112 = math.log1p %111 : vector<16x128xf32>
    %113 = arith.subf %107, %112 : vector<16x128xf32>
    %c0_34 = arith.constant 0 : index
    %c0_35 = arith.constant 0 : index
    %114 = vector.load %arg9[%c0_34, %c0_35] : memref<16x128xf32, #tpu.memory_space<vmem>>, vector<16x128xf32>
    tpu.vector_store %arg9[%c0_34, %c0_35], %113 {strides = array<i32>} : memref<16x128xf32, #tpu.memory_space<vmem>>, vector<16x128xf32>,
    return
  }
}

</mosaic_0001>

<llo_original>
// kernel: performance_net_model.1
$region0: #{performance_net_model.1}
  #allocation0 [shape = 'u32[]', space=smem, size = 0x4, offset = 0x4, fixed_abs, tag = 'smem constant byte address 0x4 - core index']
  #allocation1 [shape = 'u32[144,128]{1,0:T(1,128)}', space=vmem, size = 0x12000, scoped, tag = 'internal scratch']
  %s0 = inlined_call_operand.vmem [shape: bf16[176,128], index: 0, kind: input, shape index: {}]
  %s1 = inlined_call_operand.vmem [shape: bf16[32,176], index: 1, kind: input, shape index: {}]
  %s2 = inlined_call_operand.vmem [shape: f32[32,1], index: 2, kind: input, shape index: {}]
  %s3 = inlined_call_operand.vmem [shape: bf16[96,32], index: 3, kind: input, shape index: {}]
  %s4 = inlined_call_operand.vmem [shape: f32[32,1], index: 4, kind: input, shape index: {}]
  %s5 = inlined_call_operand.vmem [shape: bf16[96,32], index: 5, kind: input, shape index: {}]
  %s6 = inlined_call_operand.vmem [shape: f32[32,1], index: 6, kind: input, shape index: {}]
  %s7 = inlined_call_operand.vmem [shape: bf16[48,32], index: 7, kind: input, shape index: {}]
  %s8 = inlined_call_operand.vmem [shape: f32[16,1], index: 8, kind: input, shape index: {}]
  %s9 = inlined_call_operand.vmem [shape: f32[16,128], index: 9, kind: output, shape index: {}]
  %s10 = sld [smem:[#allocation0]]
  $region46: #{performance_net_model.1} parent=0
    _
  %s12 = ssub.s32 1, %s10
  %s13 = scalar_select 0, %s12, %s10
  // Predicated region
  $region2: #{performance_net_model.1} parent=0 // pred_check
    _
  $region3: #{performance_net_model.1} parent=0 // pred_check_branch
    %15 = sbr.rel (0) target = $region5
  $region4: #{performance_net_model.1} parent=0 // pred_region
    _
  $region5: #{performance_net_model.1} parent=0 // pred_fallthru
    _
  // Predicated region
  $region6: #{performance_net_model.1} parent=0 // pred_check
    _
  $region7: #{performance_net_model.1} parent=0 // pred_check_branch
    %17 = sbr.rel (0) target = $region9
  $region8: #{performance_net_model.1} parent=0 // pred_region
    _
  $region9: #{performance_net_model.1} parent=0 // pred_fallthru
    _
  // Predicated region
  $region10: #{performance_net_model.1} parent=0 // pred_check
    _
  $region11: #{performance_net_model.1} parent=0 // pred_check_branch
    %19 = sbr.rel (0) target = $region13
  $region12: #{performance_net_model.1} parent=0 // pred_region
    _
  $region13: #{performance_net_model.1} parent=0 // pred_fallthru
    _
  // Predicated region
  $region14: #{performance_net_model.1} parent=0 // pred_check
    _
  $region15: #{performance_net_model.1} parent=0 // pred_check_branch
    %21 = sbr.rel (0) target = $region17
  $region16: #{performance_net_model.1} parent=0 // pred_region
    _
  $region17: #{performance_net_model.1} parent=0 // pred_fallthru
    _
  // Predicated region
  $region18: #{performance_net_model.1} parent=0 // pred_check
    _
  $region19: #{performance_net_model.1} parent=0 // pred_check_branch
    %23 = sbr.rel (0) target = $region21
  $region20: #{performance_net_model.1} parent=0 // pred_region
    _
  $region21: #{performance_net_model.1} parent=0 // pred_fallthru
    _
  // Predicated region
  $region22: #{performance_net_model.1} parent=0 // pred_check
    _
  $region23: #{performance_net_model.1} parent=0 // pred_check_branch
    %25 = sbr.rel (0) target = $region25
  $region24: #{performance_net_model.1} parent=0 // pred_region
    _
  $region25: #{performance_net_model.1} parent=0 // pred_fallthru
    _
  // Predicated region
  $region26: #{performance_net_model.1} parent=0 // pred_check
    _
  $region27: #{performance_net_model.1} parent=0 // pred_check_branch
    %27 = sbr.rel (0) target = $region29
  $region28: #{performance_net_model.1} parent=0 // pred_region
    _
  $region29: #{performance_net_model.1} parent=0 // pred_fallthru
    _
  // Predicated region
  $region30: #{performance_net_model.1} parent=0 // pred_check
    _
  $region31: #{performance_net_model.1} parent=0 // pred_check_branch
    %29 = sbr.rel (0) target = $region33
  $region32: #{performance_net_model.1} parent=0 // pred_region
    _
  $region33: #{performance_net_model.1} parent=0 // pred_fallthru
    _
  // Predicated region
  $region34: #{performance_net_model.1} parent=0 // pred_check
    _
  $region35: #{performance_net_model.1} parent=0 // pred_check_branch
    %31 = sbr.rel (0) target = $region37
  $region36: #{performance_net_model.1} parent=0 // pred_region
    _
  $region37: #{performance_net_model.1} parent=0 // pred_fallthru
    _
  %v33 = vlaneseq
  %v34 = vand.u32 %v33, 127
  %vm35 = vcmp.lt.s32.totalorder %v34, 0
  %v36 = vsub.s32 0, %v34
  %v37 = vsel %vm35, %v36, %v34
  %v38 = vshrl.u32 %v37, 6
  %v39 = vand.u32 %v37, 63
  %v40 = vsub.s32 0, %v39
  %v41 = vsel %vm35, %v40, %v39
  %vm42 = vcmp.ne.s32.totalorder %v41, 0
  %vm43 = vcmp.lt.s32.totalorder %v41, 0
  %vm44 = vmand %vm43, %vm42
  %v45 = vadd.s32 %v41, 64
  %v46 = vsel %vm44, %v45, %v41
  %vm47 = vcmp.eq.s32.totalorder %v46, 0
  %vm48 = vcmp.eq.s32.totalorder %v46, 63
  %v49 = vld [vmem:[%s1] sm:$0xff]
  %v50 = vld [vmem:[%s1 + $0x8] sm:$0xff]
  %v51 = vld [vmem:[%s1 + $0x10] sm:$0xff]
  %v52 = vld [vmem:[%s1 + $0x18] sm:$0xff]
  %v53 = vld [vmem:[%s0] sm:$0xf]
  %v54 = vld [vmem:[%s0 + $0x4] sm:$0xf]
  %v55 = vld [vmem:[%s0 + $0x8] sm:$0xf]
  %v56 = vld [vmem:[%s0 + $0xc] sm:$0xf]
  %v57 = vld [vmem:[%s0 + $0x10] sm:$0xf]
  %v58 = vld [vmem:[%s0 + $0x14] sm:$0xf]
  %v59 = vld [vmem:[%s0 + $0x18] sm:$0xf]
  %v60 = vld [vmem:[%s0 + $0x1c] sm:$0xf]
  %v61 = vld [vmem:[%s0 + $0x20] sm:$0xf]
  %v62 = vld [vmem:[%s0 + $0x24] sm:$0xf]
  %v63 = vld [vmem:[%s0 + $0x28] sm:$0xf]
  %v64 = vld [vmem:[%s0 + $0x2c] sm:$0xf]
  %v65 = vld [vmem:[%s0 + $0x30] sm:$0xf]
  %v66 = vld [vmem:[%s0 + $0x34] sm:$0xf]
  %v67 = vld [vmem:[%s0 + $0x38] sm:$0xf]
  %v68 = vld [vmem:[%s0 + $0x3c] sm:$0xf]
  %v69 = vld [vmem:[%s0 + $0x40] sm:$0xf]
  %v70 = vld [vmem:[%s0 + $0x44] sm:$0xf]
  %v71 = vld [vmem:[%s0 + $0x48] sm:$0xf]
  %v72 = vld [vmem:[%s0 + $0x4c] sm:$0xf]
  %v73 = vld [vmem:[%s0 + $0x50] sm:$0xf]
  %v74 = vld [vmem:[%s0 + $0x54] sm:$0xf]
  %v75 = vld [vmem:[%s2] sm:$0xff]
  %v76 = vld [vmem:[%s2 + $0x8] sm:$0xff]
  %v77 = vld [vmem:[%s2 + $0x10] sm:$0xff]
  %v78 = vld [vmem:[%s2 + $0x18] sm:$0xff]
  %80 = vset.pattern.permute.xlu0 0
  %81 = vperm.xlu0 %80, %v75
  %v82 = vpop.permute.xlu0 %81
  %85 = vset.pattern.permute.xlu0 0
  %86 = vperm.xlu0 %85, %v76
  %v87 = vpop.permute.xlu0 %86
  %90 = vset.pattern.permute.xlu0 0
  %91 = vperm.xlu0 %90, %v77
  %v92 = vpop.permute.xlu0 %91
  %95 = vset.pattern.permute.xlu0 0
  %96 = vperm.xlu0 %95, %v78
  %v97 = vpop.permute.xlu0 %96
  %v103 = vunpack.c.l.b16 %v49
  %v104 = vunpack.c.h.b16 %v49
  %v105 = vunpack.c.l.b16 %v50
  %v106 = vunpack.c.h.b16 %v50
  %v107 = vunpack.c.l.b16 %v51
  %v108 = vunpack.c.h.b16 %v51
  %v109 = vunpack.c.l.b16 %v52
  %v110 = vunpack.c.h.b16 %v52
  %v111 = vpack.c.b16 %v105, %v103
  %v112 = vpack.c.b16 %v106, %v104
  %v113 = vpack.c.b16 %v109, %v107
  %v114 = vpack.c.b16 %v110, %v108
  %v139 = vunpack.c.l.b16 %v53
  %v140 = vunpack.c.l.b16 %v54
  %v141 = vunpack.c.l.b16 %v55
  %v142 = vunpack.c.l.b16 %v56
  %v143 = vunpack.c.l.b16 %v57
  %v144 = vunpack.c.l.b16 %v58
  %v145 = vunpack.c.l.b16 %v59
  %v146 = vunpack.c.l.b16 %v60
  %v147 = vunpack.c.l.b16 %v61
  %v148 = vunpack.c.l.b16 %v62
  %v149 = vunpack.c.l.b16 %v63
  %v150 = vunpack.c.l.b16 %v64
  %v151 = vunpack.c.l.b16 %v65
  %v152 = vunpack.c.l.b16 %v66
  %v153 = vunpack.c.l.b16 %v67
  %v154 = vunpack.c.l.b16 %v68
  %v155 = vunpack.c.l.b16 %v69
  %v156 = vunpack.c.l.b16 %v70
  %v157 = vunpack.c.l.b16 %v71
  %v158 = vunpack.c.l.b16 %v72
  %v159 = vunpack.c.l.b16 %v73
  %v160 = vunpack.c.l.b16 %v74
  %v161 = vpack.c.b16 %v140, %v139
  %v162 = vpack.c.b16 %v142, %v141
  %v163 = vpack.c.b16 %v144, %v143
  %v164 = vpack.c.b16 %v146, %v145
  %v165 = vpack.c.b16 %v148, %v147
  %v166 = vpack.c.b16 %v150, %v149
  %v167 = vpack.c.b16 %v152, %v151
  %v168 = vpack.c.b16 %v154, %v153
  %v169 = vpack.c.b16 %v156, %v155
  %v170 = vpack.c.b16 %v158, %v157
  %v171 = vpack.c.b16 %v160, %v159
  %vm183 = vcmask 392192
  %v185 = vsel %vm183, %v112, 0
  %v188 = vsel %vm183, %v114, 0
  %190 = vmatprep.subr.bf16.mxu0 0
  %191 = vmatpush1.bf16.msra.mxu0 %v161
  %192 = vmatprep.subr.bf16.mxu0 0
  %193 = vmatpush1.bf16.msra.mxu0 %v162
  %194 = vmatprep.subr.bf16.mxu0 0
  %195 = vmatpush1.bf16.msra.mxu0 %v163
  %196 = vmatprep.subr.bf16.mxu0 0
  %197 = vmatpush1.bf16.msra.mxu0 %v164
  %198 = vmatprep.subr.bf16.mxu0 0
  %199 = vmatpush1.bf16.msra.mxu0 %v165
  %200 = vmatprep.subr.bf16.mxu0 0
  %201 = vmatpush1.bf16.msra.mxu0 %v166
  %202 = vmatprep.subr.bf16.mxu0 0
  %203 = vmatpush1.bf16.msra.mxu0 %v167
  %204 = vmatprep.subr.bf16.mxu0 0
  %205 = vmatpush1.bf16.msra.mxu0 %v168
  %206 = vmatprep.subr.bf16.mxu0 0
  %207 = vmatpush1.bf16.msra.mxu0 %v169
  %208 = vmatprep.subr.bf16.mxu0 0
  %209 = vmatpush1.bf16.msra.mxu0 %v170
  %210 = vmatprep.subr.bf16.mxu0 0
  %211 = vmatpush1.bf16.msra.mxu0 %v171
  %212 = vmatprep.subr.bf16.mxu0 0
  %213 = vmatpush1.bf16.msra.mxu0 0
  %214 = vmatprep.subr.bf16.mxu0 0
  %215 = vmatpush1.bf16.msra.mxu0 0
  %216 = vmatprep.subr.bf16.mxu0 0
  %217 = vmatpush1.bf16.msra.mxu0 0
  %218 = vmatprep.subr.bf16.mxu0 0
  %219 = vmatpush1.bf16.msra.mxu0 0
  %220 = vmatprep.subr.bf16.mxu0 0
  %221 = vmatpush1.bf16.msra.mxu0 0
  %222 = vmatprep.mubr.bf16.mxu0 %v185
  %223 = vmatmul.mubr.bf16.gmra.mrb[0].mxu0 %v111
  %v224 = vpop.f32.mrb[0].mxu0
  %v225 = vadd.f32 %v82, %v224
  %v226 = vpop.f32.mrb[0].mxu0
  %v227 = vpop.f32.mrb[0].mxu0
  %v228 = vadd.f32 %v87, %v227
  %v229 = vpop.f32.mrb[0].mxu0
  %230 = vmatprep.mubr.bf16.mxu0 %v188
  %231 = vmatmul.mubr.bf16.gmra.mrb[0].mxu0 %v113
  %v232 = vpop.f32.mrb[0].mxu0
  %v233 = vadd.f32 %v92, %v232
  %v234 = vpop.f32.mrb[0].mxu0
  %v235 = vpop.f32.mrb[0].mxu0
  %v236 = vadd.f32 %v97, %v235
  %v237 = vpop.f32.mrb[0].mxu0
  %238 = vdwg.mxu0
  %v239 = vld [vmem:[%s3] sm:$0xf]
  %v240 = vld [vmem:[%s3 + $0x4] sm:$0xf]
  %v241 = vld [vmem:[%s3 + $0x8] sm:$0xf]
  %v242 = vld [vmem:[%s3 + $0xc] sm:$0xf]
  %v243 = vld [vmem:[%s3 + $0x10] sm:$0xf]
  %v244 = vld [vmem:[%s3 + $0x14] sm:$0xf]
  %v245 = vld [vmem:[%s3 + $0x18] sm:$0xf]
  %v246 = vld [vmem:[%s3 + $0x1c] sm:$0xf]
  %v247 = vld [vmem:[%s3 + $0x20] sm:$0xf]
  %v248 = vld [vmem:[%s3 + $0x24] sm:$0xf]
  %v249 = vld [vmem:[%s3 + $0x28] sm:$0xf]
  %v250 = vld [vmem:[%s3 + $0x2c] sm:$0xf]
  %v251 = vpack.c.bf16 %v228, %v225
  %v252 = vpack.c.bf16 %v236, %v233
  %v265 = vunpack.c.l.b16 %v239
  %v266 = vunpack.c.l.b16 %v240
  %v267 = vunpack.c.l.b16 %v241
  %v268 = vunpack.c.l.b16 %v242
  %v269 = vunpack.c.l.b16 %v243
  %v270 = vunpack.c.l.b16 %v244
  %v271 = vunpack.c.l.b16 %v245
  %v272 = vunpack.c.l.b16 %v246
  %v273 = vunpack.c.l.b16 %v247
  %v274 = vunpack.c.l.b16 %v248
  %v275 = vunpack.c.l.b16 %v249
  %v276 = vunpack.c.l.b16 %v250
  %v277 = vpack.c.b16 %v266, %v265
  %v278 = vpack.c.b16 %v268, %v267
  %v279 = vpack.c.b16 %v270, %v269
  %v280 = vpack.c.b16 %v272, %v271
  %v281 = vpack.c.b16 %v274, %v273
  %v282 = vpack.c.b16 %v276, %v275
  %vm283 = vcmask 261120
  %v285 = vsel %vm283, %v277, 0
  %v288 = vsel %vm283, %v278, 0
  %v291 = vsel %vm283, %v279, 0
  %v294 = vsel %vm283, %v280, 0
  %v297 = vsel %vm283, %v281, 0
  %v300 = vsel %vm283, %v282, 0
  %302 = vmatprep.subr.bf16.mxu0 0
  %303 = vmatpush1.bf16.msra.mxu0 %v251
  %304 = vmatprep.subr.bf16.mxu0 0
  %305 = vmatpush1.bf16.msra.mxu0 %v252
  %306 = vmatprep.subr.bf16.mxu0 0
  %307 = vmatpush1.bf16.msra.mxu0 0
  %308 = vmatprep.subr.bf16.mxu0 0
  %309 = vmatpush1.bf16.msra.mxu0 0
  %310 = vmatprep.subr.bf16.mxu0 0
  %311 = vmatpush1.bf16.msra.mxu0 0
  %312 = vmatprep.subr.bf16.mxu0 0
  %313 = vmatpush1.bf16.msra.mxu0 0
  %314 = vmatprep.subr.bf16.mxu0 0
  %315 = vmatpush1.bf16.msra.mxu0 0
  %316 = vmatprep.subr.bf16.mxu0 0
  %317 = vmatpush1.bf16.msra.mxu0 0
  %318 = vmatprep.subr.bf16.mxu0 0
  %319 = vmatpush1.bf16.msra.mxu0 0
  %320 = vmatprep.subr.bf16.mxu0 0
  %321 = vmatpush1.bf16.msra.mxu0 0
  %322 = vmatprep.subr.bf16.mxu0 0
  %323 = vmatpush1.bf16.msra.mxu0 0
  %324 = vmatprep.subr.bf16.mxu0 0
  %325 = vmatpush1.bf16.msra.mxu0 0
  %326 = vmatprep.subr.bf16.mxu0 0
  %327 = vmatpush1.bf16.msra.mxu0 0
  %328 = vmatprep.subr.bf16.mxu0 0
  %329 = vmatpush1.bf16.msra.mxu0 0
  %330 = vmatprep.subr.bf16.mxu0 0
  %331 = vmatpush1.bf16.msra.mxu0 0
  %332 = vmatprep.subr.bf16.mxu0 0
  %333 = vmatpush1.bf16.msra.mxu0 0
  %334 = vmatprep.mubr.bf16.mxu0 0
  %335 = vmatmul.mubr.bf16.gmra.mrb[0].mxu0 %v285
  %v336 = vpop.f32.mrb[0].mxu0
  %v337 = vadd.f32 0.0, %v336
  %v338 = vpop.f32.mrb[0].mxu0
  %v339 = vpop.f32.mrb[0].mxu0
  %v340 = vadd.f32 0.0, %v339
  %v341 = vpop.f32.mrb[0].mxu0
  %342 = vmatprep.mubr.bf16.mxu0 0
  %343 = vmatmul.mubr.bf16.gmra.mrb[0].mxu0 %v288
  %v344 = vpop.f32.mrb[0].mxu0
  %v345 = vadd.f32 0.0, %v344
  %v346 = vpop.f32.mrb[0].mxu0
  %v347 = vpop.f32.mrb[0].mxu0
  %v348 = vadd.f32 0.0, %v347
  %v349 = vpop.f32.mrb[0].mxu0
  %350 = vmatprep.mubr.bf16.mxu0 0
  %351 = vmatmul.mubr.bf16.gmra.mrb[0].mxu0 %v291
  %v352 = vpop.f32.mrb[0].mxu0
  %v353 = vadd.f32 0.0, %v352
  %v354 = vpop.f32.mrb[0].mxu0
  %v355 = vpop.f32.mrb[0].mxu0
  %v356 = vadd.f32 0.0, %v355
  %v357 = vpop.f32.mrb[0].mxu0
  %358 = vmatprep.mubr.bf16.mxu0 0
  %359 = vmatmul.mubr.bf16.gmra.mrb[0].mxu0 %v294
  %v360 = vpop.f32.mrb[0].mxu0
  %v361 = vadd.f32 0.0, %v360
  %v362 = vpop.f32.mrb[0].mxu0
  %v363 = vpop.f32.mrb[0].mxu0
  %v364 = vadd.f32 0.0, %v363
  %v365 = vpop.f32.mrb[0].mxu0
  %366 = vmatprep.mubr.bf16.mxu0 0
  %367 = vmatmul.mubr.bf16.gmra.mrb[0].mxu0 %v297
  %v368 = vpop.f32.mrb[0].mxu0
  %v369 = vadd.f32 0.0, %v368
  %v370 = vpop.f32.mrb[0].mxu0
  %v371 = vpop.f32.mrb[0].mxu0
  %v372 = vadd.f32 0.0, %v371
  %v373 = vpop.f32.mrb[0].mxu0
  %374 = vmatprep.mubr.bf16.mxu0 0
  %375 = vmatmul.mubr.bf16.gmra.mrb[0].mxu0 %v300
  %v376 = vpop.f32.mrb[0].mxu0
  %v377 = vadd.f32 0.0, %v376
  %v378 = vpop.f32.mrb[0].mxu0
  %v379 = vpop.f32.mrb[0].mxu0
  %v380 = vadd.f32 0.0, %v379
  %v381 = vpop.f32.mrb[0].mxu0
  %382 = vdwg.mxu0
  %387 = vrot.lane.b32.xlu0 %v337, 1
  %v388 = vpop.permute.xlu0 %387
  %389 = vrot.lane.b32.xlu0 %v340, 1
  %v390 = vpop.permute.xlu0 %389
  %391 = vrot.lane.b32.xlu0 %v345, 1
  %v392 = vpop.permute.xlu0 %391
  %393 = vrot.lane.b32.xlu0 %v348, 1
  %v394 = vpop.permute.xlu0 %393
  %v399 = vsel %vm47, 1, 0
  %vm400 = vcmp.eq.s32.totalorder %v399, 1
  %v401 = vsel %vm400, 0.0, %v388
  %v402 = vsel %vm400, 0.0, %v390
  %v403 = vsel %vm400, 0.0, %v392
  %v404 = vsel %vm400, 0.0, %v394
  %409 = vrot.lane.b32.xlu0 %v369, 127
  %v410 = vpop.permute.xlu0 %409
  %411 = vrot.lane.b32.xlu0 %v372, 127
  %v412 = vpop.permute.xlu0 %411
  %413 = vrot.lane.b32.xlu0 %v377, 127
  %v414 = vpop.permute.xlu0 %413
  %415 = vrot.lane.b32.xlu0 %v380, 127
  %v416 = vpop.permute.xlu0 %415
  %v421 = vsel %vm48, 1, 0
  %vm422 = vcmp.eq.s32.totalorder %v421, 1
  %v423 = vsel %vm422, 0.0, %v410
  %v424 = vsel %vm422, 0.0, %v412
  %v425 = vsel %vm422, 0.0, %v414
  %v426 = vsel %vm422, 0.0, %v416
  %v427 = vadd.f32 %v353, %v401
  %v428 = vadd.f32 %v356, %v402
  %v429 = vadd.f32 %v361, %v403
  %v430 = vadd.f32 %v364, %v404
  %v431 = vadd.f32 %v427, %v423
  %v432 = vadd.f32 %v428, %v424
  %v433 = vadd.f32 %v429, %v425
  %v434 = vadd.f32 %v430, %v426
  %v435 = vld [vmem:[%s4] sm:$0xff]
  %v436 = vld [vmem:[%s4 + $0x8] sm:$0xff]
  %v437 = vld [vmem:[%s4 + $0x10] sm:$0xff]
  %v438 = vld [vmem:[%s4 + $0x18] sm:$0xff]
  %440 = vset.pattern.permute.xlu0 0
  %441 = vperm.xlu0 %440, %v435
  %v442 = vpop.permute.xlu0 %441
  %445 = vset.pattern.permute.xlu0 0
  %446 = vperm.xlu0 %445, %v436
  %v447 = vpop.permute.xlu0 %446
  %450 = vset.pattern.permute.xlu0 0
  %451 = vperm.xlu0 %450, %v437
  %v452 = vpop.permute.xlu0 %451
  %455 = vset.pattern.permute.xlu0 0
  %456 = vperm.xlu0 %455, %v438
  %v457 = vpop.permute.xlu0 %456
  %v459 = vadd.f32 %v431, %v442
  %v460 = vadd.f32 %v432, %v447
  %v461 = vadd.f32 %v433, %v452
  %v462 = vadd.f32 %v434, %v457
  %v463 = vmax.f32 %v459, 0.0
  %v464 = vmax.f32 %v460, 0.0
  %v465 = vmax.f32 %v461, 0.0
  %v466 = vmax.f32 %v462, 0.0
  %v467 = vld [vmem:[%s5] sm:$0xf]
  %v468 = vld [vmem:[%s5 + $0x4] sm:$0xf]
  %v469 = vld [vmem:[%s5 + $0x8] sm:$0xf]
  %v470 = vld [vmem:[%s5 + $0xc] sm:$0xf]
  %v471 = vld [vmem:[%s5 + $0x10] sm:$0xf]
  %v472 = vld [vmem:[%s5 + $0x14] sm:$0xf]
  %v473 = vld [vmem:[%s5 + $0x18] sm:$0xf]
  %v474 = vld [vmem:[%s5 + $0x1c] sm:$0xf]
  %v475 = vld [vmem:[%s5 + $0x20] sm:$0xf]
  %v476 = vld [vmem:[%s5 + $0x24] sm:$0xf]
  %v477 = vld [vmem:[%s5 + $0x28] sm:$0xf]
  %v478 = vld [vmem:[%s5 + $0x2c] sm:$0xf]
  %v479 = vpack.c.bf16 %v464, %v463
  %v480 = vpack.c.bf16 %v466, %v465
  %v493 = vunpack.c.l.b16 %v467
  %v494 = vunpack.c.l.b16 %v468
  %v495 = vunpack.c.l.b16 %v469
  %v496 = vunpack.c.l.b16 %v470
  %v497 = vunpack.c.l.b16 %v471
  %v498 = vunpack.c.l.b16 %v472
  %v499 = vunpack.c.l.b16 %v473
  %v500 = vunpack.c.l.b16 %v474
  %v501 = vunpack.c.l.b16 %v475
  %v502 = vunpack.c.l.b16 %v476
  %v503 = vunpack.c.l.b16 %v477
  %v504 = vunpack.c.l.b16 %v478
  %v505 = vpack.c.b16 %v494, %v493
  %v506 = vpack.c.b16 %v496, %v495
  %v507 = vpack.c.b16 %v498, %v497
  %v508 = vpack.c.b16 %v500, %v499
  %v509 = vpack.c.b16 %v502, %v501
  %v510 = vpack.c.b16 %v504, %v503
  %v512 = vsel %vm283, %v505, 0
  %v515 = vsel %vm283, %v506, 0
  %v518 = vsel %vm283, %v507, 0
  %v521 = vsel %vm283, %v508, 0
  %v524 = vsel %vm283, %v509, 0
  %v527 = vsel %vm283, %v510, 0
  %529 = vmatprep.subr.bf16.mxu0 0
  %530 = vmatpush1.bf16.msra.mxu0 %v479
  %531 = vmatprep.subr.bf16.mxu0 0
  %532 = vmatpush1.bf16.msra.mxu0 %v480
  %533 = vmatprep.subr.bf16.mxu0 0
  %534 = vmatpush1.bf16.msra.mxu0 0
  %535 = vmatprep.subr.bf16.mxu0 0
  %536 = vmatpush1.bf16.msra.mxu0 0
  %537 = vmatprep.subr.bf16.mxu0 0
  %538 = vmatpush1.bf16.msra.mxu0 0
  %539 = vmatprep.subr.bf16.mxu0 0
  %540 = vmatpush1.bf16.msra.mxu0 0
  %541 = vmatprep.subr.bf16.mxu0 0
  %542 = vmatpush1.bf16.msra.mxu0 0
  %543 = vmatprep.subr.bf16.mxu0 0
  %544 = vmatpush1.bf16.msra.mxu0 0
  %545 = vmatprep.subr.bf16.mxu0 0
  %546 = vmatpush1.bf16.msra.mxu0 0
  %547 = vmatprep.subr.bf16.mxu0 0
  %548 = vmatpush1.bf16.msra.mxu0 0
  %549 = vmatprep.subr.bf16.mxu0 0
  %550 = vmatpush1.bf16.msra.mxu0 0
  %551 = vmatprep.subr.bf16.mxu0 0
  %552 = vmatpush1.bf16.msra.mxu0 0
  %553 = vmatprep.subr.bf16.mxu0 0
  %554 = vmatpush1.bf16.msra.mxu0 0
  %555 = vmatprep.subr.bf16.mxu0 0
  %556 = vmatpush1.bf16.msra.mxu0 0
  %557 = vmatprep.subr.bf16.mxu0 0
  %558 = vmatpush1.bf16.msra.mxu0 0
  %559 = vmatprep.subr.bf16.mxu0 0
  %560 = vmatpush1.bf16.msra.mxu0 0
  %561 = vmatprep.mubr.bf16.mxu0 0
  %562 = vmatmul.mubr.bf16.gmra.mrb[0].mxu0 %v512
  %v563 = vpop.f32.mrb[0].mxu0
  %v564 = vadd.f32 0.0, %v563
  %v565 = vpop.f32.mrb[0].mxu0
  %v566 = vpop.f32.mrb[0].mxu0
  %v567 = vadd.f32 0.0, %v566
  %v568 = vpop.f32.mrb[0].mxu0
  %569 = vmatprep.mubr.bf16.mxu0 0
  %570 = vmatmul.mubr.bf16.gmra.mrb[0].mxu0 %v515
  %v571 = vpop.f32.mrb[0].mxu0
  %v572 = vadd.f32 0.0, %v571
  %v573 = vpop.f32.mrb[0].mxu0
  %v574 = vpop.f32.mrb[0].mxu0
  %v575 = vadd.f32 0.0, %v574
  %v576 = vpop.f32.mrb[0].mxu0
  %577 = vmatprep.mubr.bf16.mxu0 0
  %578 = vmatmul.mubr.bf16.gmra.mrb[0].mxu0 %v518
  %v579 = vpop.f32.mrb[0].mxu0
  %v580 = vadd.f32 0.0, %v579
  %v581 = vpop.f32.mrb[0].mxu0
  %v582 = vpop.f32.mrb[0].mxu0
  %v583 = vadd.f32 0.0, %v582
  %v584 = vpop.f32.mrb[0].mxu0
  %585 = vmatprep.mubr.bf16.mxu0 0
  %586 = vmatmul.mubr.bf16.gmra.mrb[0].mxu0 %v521
  %v587 = vpop.f32.mrb[0].mxu0
  %v588 = vadd.f32 0.0, %v587
  %v589 = vpop.f32.mrb[0].mxu0
  %v590 = vpop.f32.mrb[0].mxu0
  %v591 = vadd.f32 0.0, %v590
  %v592 = vpop.f32.mrb[0].mxu0
  %593 = vmatprep.mubr.bf16.mxu0 0
  %594 = vmatmul.mubr.bf16.gmra.mrb[0].mxu0 %v524
  %v595 = vpop.f32.mrb[0].mxu0
  %v596 = vadd.f32 0.0, %v595
  %v597 = vpop.f32.mrb[0].mxu0
  %v598 = vpop.f32.mrb[0].mxu0
  %v599 = vadd.f32 0.0, %v598
  %v600 = vpop.f32.mrb[0].mxu0
  %601 = vmatprep.mubr.bf16.mxu0 0
  %602 = vmatmul.mubr.bf16.gmra.mrb[0].mxu0 %v527
  %v603 = vpop.f32.mrb[0].mxu0
  %v604 = vadd.f32 0.0, %v603
  %v605 = vpop.f32.mrb[0].mxu0
  %v606 = vpop.f32.mrb[0].mxu0
  %v607 = vadd.f32 0.0, %v606
  %v608 = vpop.f32.mrb[0].mxu0
  %609 = vdwg.mxu0
  %614 = vrot.lane.b32.xlu0 %v564, 1
  %v615 = vpop.permute.xlu0 %614
  %616 = vrot.lane.b32.xlu0 %v567, 1
  %v617 = vpop.permute.xlu0 %616
  %618 = vrot.lane.b32.xlu0 %v572, 1
  %v619 = vpop.permute.xlu0 %618
  %620 = vrot.lane.b32.xlu0 %v575, 1
  %v621 = vpop.permute.xlu0 %620
  %v626 = vsel %vm400, 0.0, %v615
  %v627 = vsel %vm400, 0.0, %v617
  %v628 = vsel %vm400, 0.0, %v619
  %v629 = vsel %vm400, 0.0, %v621
  %634 = vrot.lane.b32.xlu0 %v596, 127
  %v635 = vpop.permute.xlu0 %634
  %636 = vrot.lane.b32.xlu0 %v599, 127
  %v637 = vpop.permute.xlu0 %636
  %638 = vrot.lane.b32.xlu0 %v604, 127
  %v639 = vpop.permute.xlu0 %638
  %640 = vrot.lane.b32.xlu0 %v607, 127
  %v641 = vpop.permute.xlu0 %640
  %v646 = vsel %vm422, 0.0, %v635
  %v647 = vsel %vm422, 0.0, %v637
  %v648 = vsel %vm422, 0.0, %v639
  %v649 = vsel %vm422, 0.0, %v641
  %v650 = vadd.f32 %v580, %v626
  %v651 = vadd.f32 %v583, %v627
  %v652 = vadd.f32 %v588, %v628
  %v653 = vadd.f32 %v591, %v629
  %v654 = vadd.f32 %v650, %v646
  %v655 = vadd.f32 %v651, %v647
  %v656 = vadd.f32 %v652, %v648
  %v657 = vadd.f32 %v653, %v649
  %v658 = vld [vmem:[%s6] sm:$0xff]
  %v659 = vld [vmem:[%s6 + $0x8] sm:$0xff]
  %v660 = vld [vmem:[%s6 + $0x10] sm:$0xff]
  %v661 = vld [vmem:[%s6 + $0x18] sm:$0xff]
  %663 = vset.pattern.permute.xlu0 0
  %664 = vperm.xlu0 %663, %v658
  %v665 = vpop.permute.xlu0 %664
  %668 = vset.pattern.permute.xlu0 0
  %669 = vperm.xlu0 %668, %v659
  %v670 = vpop.permute.xlu0 %669
  %673 = vset.pattern.permute.xlu0 0
  %674 = vperm.xlu0 %673, %v660
  %v675 = vpop.permute.xlu0 %674
  %678 = vset.pattern.permute.xlu0 0
  %679 = vperm.xlu0 %678, %v661
  %v680 = vpop.permute.xlu0 %679
  %v682 = vadd.f32 %v654, %v665
  %v683 = vadd.f32 %v655, %v670
  %v684 = vadd.f32 %v656, %v675
  %v685 = vadd.f32 %v657, %v680
  %v686 = vmax.f32 %v682, 0.0
  %v687 = vmax.f32 %v683, 0.0
  %v688 = vmax.f32 %v684, 0.0
  %v689 = vmax.f32 %v685, 0.0
  %v690 = vld [vmem:[%s7] sm:$0xf]
  %v691 = vld [vmem:[%s7 + $0x4] sm:$0xf]
  %v692 = vld [vmem:[%s7 + $0x8] sm:$0xf]
  %v693 = vld [vmem:[%s7 + $0xc] sm:$0xf]
  %v694 = vld [vmem:[%s7 + $0x10] sm:$0xf]
  %v695 = vld [vmem:[%s7 + $0x14] sm:$0xf]
  %v696 = vpack.c.bf16 %v687, %v686
  %v697 = vpack.c.bf16 %v689, %v688
  %v704 = vunpack.c.l.b16 %v690
  %v705 = vunpack.c.l.b16 %v691
  %v706 = vunpack.c.l.b16 %v692
  %v707 = vunpack.c.l.b16 %v693
  %v708 = vunpack.c.l.b16 %v694
  %v709 = vunpack.c.l.b16 %v695
  %v710 = vpack.c.b16 %v705, %v704
  %v711 = vpack.c.b16 %v707, %v706
  %v712 = vpack.c.b16 %v709, %v708
  %v714 = vsel %vm283, %v710, 0
  %v717 = vsel %vm283, %v711, 0
  %v720 = vsel %vm283, %v712, 0
  %722 = vmatprep.subr.bf16.mxu0 0
  %723 = vmatpush1.bf16.msra.mxu0 %v696
  %724 = vmatprep.subr.bf16.mxu0 0
  %725 = vmatpush1.bf16.msra.mxu0 %v697
  %726 = vmatprep.subr.bf16.mxu0 0
  %727 = vmatpush1.bf16.msra.mxu0 0
  %728 = vmatprep.subr.bf16.mxu0 0
  %729 = vmatpush1.bf16.msra.mxu0 0
  %730 = vmatprep.subr.bf16.mxu0 0
  %731 = vmatpush1.bf16.msra.mxu0 0
  %732 = vmatprep.subr.bf16.mxu0 0
  %733 = vmatpush1.bf16.msra.mxu0 0
  %734 = vmatprep.subr.bf16.mxu0 0
  %735 = vmatpush1.bf16.msra.mxu0 0
  %736 = vmatprep.subr.bf16.mxu0 0
  %737 = vmatpush1.bf16.msra.mxu0 0
  %738 = vmatprep.subr.bf16.mxu0 0
  %739 = vmatpush1.bf16.msra.mxu0 0
  %740 = vmatprep.subr.bf16.mxu0 0
  %741 = vmatpush1.bf16.msra.mxu0 0
  %742 = vmatprep.subr.bf16.mxu0 0
  %743 = vmatpush1.bf16.msra.mxu0 0
  %744 = vmatprep.subr.bf16.mxu0 0
  %745 = vmatpush1.bf16.msra.mxu0 0
  %746 = vmatprep.subr.bf16.mxu0 0
  %747 = vmatpush1.bf16.msra.mxu0 0
  %748 = vmatprep.subr.bf16.mxu0 0
  %749 = vmatpush1.bf16.msra.mxu0 0
  %750 = vmatprep.subr.bf16.mxu0 0
  %751 = vmatpush1.bf16.msra.mxu0 0
  %752 = vmatprep.subr.bf16.mxu0 0
  %753 = vmatpush1.bf16.msra.mxu0 0
  %754 = vmatprep.mubr.bf16.mxu0 0
  %755 = vmatmul.mubr.bf16.gmra.mrb[0].mxu0 %v714
  %v756 = vpop.f32.mrb[0].mxu0
  %v757 = vadd.f32 0.0, %v756
  %v758 = vpop.f32.mrb[0].mxu0
  %v759 = vpop.f32.mrb[0].mxu0
  %v760 = vadd.f32 0.0, %v759
  %v761 = vpop.f32.mrb[0].mxu0
  %762 = vmatprep.mubr.bf16.mxu0 0
  %763 = vmatmul.mubr.bf16.gmra.mrb[0].mxu0 %v717
  %v764 = vpop.f32.mrb[0].mxu0
  %v765 = vadd.f32 0.0, %v764
  %v766 = vpop.f32.mrb[0].mxu0
  %v767 = vpop.f32.mrb[0].mxu0
  %v768 = vadd.f32 0.0, %v767
  %v769 = vpop.f32.mrb[0].mxu0
  %770 = vmatprep.mubr.bf16.mxu0 0
  %771 = vmatmul.mubr.bf16.gmra.mrb[0].mxu0 %v720
  %v772 = vpop.f32.mrb[0].mxu0
  %v773 = vadd.f32 0.0, %v772
  %v774 = vpop.f32.mrb[0].mxu0
  %v775 = vpop.f32.mrb[0].mxu0
  %v776 = vadd.f32 0.0, %v775
  %v777 = vpop.f32.mrb[0].mxu0
  %778 = vdwg.mxu0
  %781 = vrot.lane.b32.xlu0 %v757, 1
  %v782 = vpop.permute.xlu0 %781
  %783 = vrot.lane.b32.xlu0 %v760, 1
  %v784 = vpop.permute.xlu0 %783
  %v787 = vsel %vm400, 0.0, %v782
  %v788 = vsel %vm400, 0.0, %v784
  %791 = vrot.lane.b32.xlu0 %v773, 127
  %v792 = vpop.permute.xlu0 %791
  %793 = vrot.lane.b32.xlu0 %v776, 127
  %v794 = vpop.permute.xlu0 %793
  %v797 = vsel %vm422, 0.0, %v792
  %v798 = vsel %vm422, 0.0, %v794
  %v799 = vadd.f32 %v765, %v787
  %v800 = vadd.f32 %v768, %v788
  %v801 = vadd.f32 %v799, %v797
  %v802 = vadd.f32 %v800, %v798
  %v803 = vld [vmem:[%s8] sm:$0xff]
  %v804 = vld [vmem:[%s8 + $0x8] sm:$0xff]
  %806 = vset.pattern.permute.xlu0 0
  %807 = vperm.xlu0 %806, %v803
  %v808 = vpop.permute.xlu0 %807
  %811 = vset.pattern.permute.xlu0 0
  %812 = vperm.xlu0 %811, %v804
  %v813 = vpop.permute.xlu0 %812
  %v815 = vadd.f32 %v801, %v808
  %v816 = vadd.f32 %v802, %v813
  %v817 = vmin.f32 %v815, 0.0
  %v818 = vmin.f32 %v816, 0.0
  %v819 = vand.u32 2147483647, %v815
  %v820 = vand.u32 2147483647, %v816
  %v821 = vsub.f32 0.0, %v819
  %v822 = vsub.f32 0.0, %v820
  %v823 = vmul.f32 %v821, 1.442695
  %v824 = vpow.pop %v823
  %v825 = vmul.f32 %v822, 1.442695
  %v826 = vpow.pop %v825
  %v827 = vadd.f32 %v824, 1.0
  %v828 = vlog2.pop %v827
  %v829 = vmul.f32 %v828, 0.6931472
  %v830 = vmul.f32 -0.5, %v824
  %v831 = vadd.f32 %v830, 1.0
  %v832 = vmul.f32 %v831, %v824
  %v833 = vand.u32 2147483647, %v824
  %vm834 = vcmp.lt.f32.partialorder %v833, 0.0004427343
  %v835 = vsel %vm834, %v832, %v829
  %v836 = vadd.f32 %v826, 1.0
  %v837 = vlog2.pop %v836
  %v838 = vmul.f32 %v837, 0.6931472
  %v839 = vmul.f32 -0.5, %v826
  %v840 = vadd.f32 %v839, 1.0
  %v841 = vmul.f32 %v840, %v826
  %v842 = vand.u32 2147483647, %v826
  %vm843 = vcmp.lt.f32.partialorder %v842, 0.0004427343
  %v844 = vsel %vm843, %v841, %v838
  %v845 = vsub.f32 %v817, %v835
  %v846 = vsub.f32 %v818, %v844
  %847 = vst [vmem:[%s9] sm:$0xff] %v845
  %848 = vst [vmem:[%s9 + $0x8] sm:$0xff] %v846
  // Predicated region
  $region38: #{performance_net_model.1} parent=0 // pred_check
    _
  $region39: #{performance_net_model.1} parent=0 // pred_check_branch
    %850 = sbr.rel (0) target = $region41
  $region40: #{performance_net_model.1} parent=0 // pred_region
    _
  $region41: #{performance_net_model.1} parent=0 // pred_fallthru
    _
  // Predicated region
  $region42: #{performance_net_model.1} parent=0 // pred_check
    _
  $region43: #{performance_net_model.1} parent=0 // pred_check_branch
    %852 = sbr.rel (0) target = $region45
  $region44: #{performance_net_model.1} parent=0 // pred_region
    _
  $region45: #{performance_net_model.1} parent=0 // pred_fallthru
    _

</llo_original>
